<compile_context>
chip_gen: v7x
topology: tpu7x:2x2x1
jax: 0.10.0
libtpu: 0.0.40
codegen_flags: <defaults>
</compile_context>

<pallas_src>
import functools
from dataclasses import dataclass

import jax
import jax.numpy as jnp
from jax import lax
from jax.experimental import pallas as pl
from jax.experimental.pallas import tpu as pltpu
import numpy as np


@dataclass(frozen=True)
class Config:
    hidden_dim: int = 32
    pointer_gen: bool = True


config = Config()

_LANES = 128
_NEG = -1e30  # "minus infinity" for masked logits (exp underflows to exact 0)


def _round_up(n, m):
    return ((n + m - 1) // m) * m


def _pick_block_batch(batch, seq):
    """Largest divisor of `batch` whose row block (bt*seq) stays <= 256 rows
    and keeps sublane (8) alignment whenever the batch axis is actually tiled."""
    best = batch
    for d in range(1, batch + 1):
        if batch % d:
            continue
        rows = d * seq
        if rows <= 256 and (rows % 8 == 0 or d == batch):
            best = d
    return best


# ----------------------------------------------------------------------------
# Kernels
# ----------------------------------------------------------------------------
def _pointer_gen_kernel(x_ref, attn_ref, ids_ref, w_ref, b_ref, out_ref,
                        *, inv_temp, vocab, n_batch, t_len):
    """One row-tile (n_batch batch elements x t_len steps) per grid step.

    x_ref:    (Bt*T, D)        f32   flattened activations
    attn_ref: (Bt*T, S)        f32
    ids_ref:  (1, S, Bt_ids)   int32 (Bt_ids == 1 in beam-search mode)
    w_ref:    (D, V_fused)     bf16  fused [W_proj | 0-pad | w_pgen]
    b_ref:    (1, V_fused)     f32   fused [b_proj | 0-pad | b_pgen]
    out_ref:  (Bt*T, V_fused)  f32   lane-dense (V_fused % 128 == 0)
    """
    v_fused = out_ref.shape[-1]
    s_len = attn_ref.shape[-1]

    # Single fused MXU call: vocab logits + p_gen logit (last column).
    x = x_ref[...].astype(jnp.bfloat16)
    logits = jnp.dot(x, w_ref[...], preferred_element_type=jnp.float32) + b_ref[...]

    # p_gen = sigmoid(x @ w_pgen + b_pgen)  (fused last column, no temp scale).
    p_gen = jax.nn.sigmoid(logits[:, v_fused - 1:v_fused])          # (Bt*T, 1)

    # Vocabulary softmax over real vocab columns only.  Everything >= vocab
    # (oov columns, lane padding, fused p_gen column) is masked to _NEG so
    # exp() underflows to an exact 0 -> no in-kernel concat/pad needed.
    col = lax.broadcasted_iota(jnp.int32, (1, v_fused), 1)
    scaled = jnp.where(col < vocab, logits * inv_temp, _NEG)
    m = jnp.max(scaled, axis=-1, keepdims=True)
    e = jnp.exp(scaled - m)
    denom = jnp.sum(e, axis=-1, keepdims=True)
    vocab_dist = e * pl.reciprocal(denom, approx=True)
    vocab_dist_ = p_gen * vocab_dist                                  # (Bt*T, V_fused)

    # Attention softmax (f32 elementwise, 1/temp as a multiply).
    a_scaled = attn_ref[...] * inv_temp
    am = jnp.max(a_scaled, axis=-1, keepdims=True)
    ae = jnp.exp(a_scaled - am)
    attn_dist = ae * pl.reciprocal(jnp.sum(ae, axis=-1, keepdims=True), approx=True)
    attn_dist_ = ((1.0 - p_gen) * attn_dist).astype(jnp.bfloat16)     # (Bt*T, S)

    # scatter_add over the extended vocab as a lane-dense (S, V_fused) one-hot
    # matmul.  ids differ per batch element -> short static unrolled loop.
    col_sv = lax.broadcasted_iota(jnp.int32, (s_len, v_fused), 1)     # hoisted
    for i in range(n_batch):
        ids_i = i if ids_ref.shape[2] > 1 else 0                      # beam -> col 0
        ids_col = ids_ref[0, :, ids_i:ids_i + 1]                      # (S, 1) int32
        onehot = (col_sv == ids_col).astype(jnp.bfloat16)             # (S, V_fused)
        scat = jnp.dot(attn_dist_[i * t_len:(i + 1) * t_len, :], onehot,
                       preferred_element_type=jnp.float32)            # (T, V_fused)
        out_ref[i * t_len:(i + 1) * t_len, :] = jnp.log(
            vocab_dist_[i * t_len:(i + 1) * t_len, :] + scat
        ).astype(out_ref.dtype)


def _log_softmax_kernel(x_ref, w_ref, b_ref, out_ref, *, vocab):
    """Non-pointer branch: log_softmax(x @ Wv + bv, axis=-1), lane-padded."""
    x = x_ref[...].astype(jnp.bfloat16)
    logits = jnp.dot(x, w_ref[...], preferred_element_type=jnp.float32) + b_ref[...]
    col = lax.broadcasted_iota(jnp.int32, (1, out_ref.shape[-1]), 1)
    logits = jnp.where(col < vocab, logits, _NEG)
    m = jnp.max(logits, axis=-1, keepdims=True)
    z = logits - m
    lse = jnp.log(jnp.sum(jnp.exp(z), axis=-1, keepdims=True))
    out_ref[...] = (z - lse).astype(out_ref.dtype)


# ----------------------------------------------------------------------------
# Wrapper (plain-JAX glue around pallas_call)
# ----------------------------------------------------------------------------
class Generator:
    """JAX/Pallas port of the PyTorch Generator module."""

    def __init__(self, d_model, vocab, key):
        if config.pointer_gen:
            # torch applies p_gen_linear (hidden_dim -> 1) directly to x
            # (d_model wide); this only makes sense when they match, which we
            # rely on to fuse the p_gen projection into the vocab matmul.
            assert config.hidden_dim == d_model, "pointer_gen needs hidden_dim == d_model"

        k1, k2, k3, k4 = jax.random.split(key, 4)
        bound_v = 1.0 / np.sqrt(d_model)
        bound_p = 1.0 / np.sqrt(config.hidden_dim)
        self.w_proj = jax.random.uniform(k1, (d_model, vocab), jnp.float32,
                                         -bound_v, bound_v)
        self.b_proj = jax.random.uniform(k2, (1, vocab), jnp.float32,
                                         -bound_v, bound_v)
        self.w_pgen = jax.random.uniform(k3, (config.hidden_dim, 1), jnp.float32,
                                         -bound_p, bound_p)
        self.b_pgen = jax.random.uniform(k4, (1, 1), jnp.float32,
                                         -bound_p, bound_p)
        self.d_model = d_model
        self.vocab = vocab
        self._fused_cache = {}
        self._plain_cache = None

    # ---- weight preparation (done once per oovs, outside the kernel) -------
    def _fused_weights(self, oovs):
        if oovs not in self._fused_cache:
            v_ext = self.vocab + oovs
            v_fused = _round_up(v_ext + 1, _LANES)       # +1 reserves p_gen column
            pad = v_fused - self.vocab - 1
            w = jnp.concatenate(
                [self.w_proj, jnp.zeros((self.d_model, pad), jnp.float32),
                 self.w_pgen], axis=1).astype(jnp.bfloat16)
            b = jnp.concatenate(
                [self.b_proj, jnp.zeros((1, pad), jnp.float32), self.b_pgen],
                axis=1)
            self._fused_cache[oovs] = (w, b, v_fused)
        return self._fused_cache[oovs]

    def _padded_proj(self):
        if self._plain_cache is None:
            v_pad = _round_up(self.vocab, _LANES)
            pad = v_pad - self.vocab
            w = jnp.concatenate(
                [self.w_proj, jnp.zeros((self.d_model, pad), jnp.float32)],
                axis=1).astype(jnp.bfloat16)
            b = jnp.concatenate(
                [self.b_proj, jnp.zeros((1, pad), jnp.float32)], axis=1)
            self._plain_cache = (w, b, v_pad)
        return self._plain_cache

    # ---- forward ------------------------------------------------------------
    def __call__(self, x, attn_dist=None, enc_batch_extend_vocab=None,
                 extra_zeros=None, temp=1, beam_search=False):
        B, T, D = x.shape
        V = self.vocab
        bt = _pick_block_batch(B, T)
        n_tiles = B // bt
        mt = bt * T
        x2 = x.reshape(B * T, D)

        if config.pointer_gen:
            oovs = extra_zeros.shape[1]
            S = attn_dist.shape[-1]
            v_ext = V + oovs
            w_f, b_f, v_fused = self._fused_weights(oovs)

            attn2 = attn_dist.reshape(B * T, S)
            ids = enc_batch_extend_vocab.astype(jnp.int32)
            if beam_search:
                # torch uses row 0 of the encoder ids for every beam; pass a
                # single (S, 1) column instead of a broadcast (B, S) array.
                ids3 = ids[0:1, :].T.reshape(1, S, 1)
                ids_block = (1, S, 1)
                ids_map = lambda g: (0, 0, 0)
            else:
                # (n_tiles, S, bt): ids on sublanes so the one-hot is built
                # lane-dense inside the kernel with only static slices.
                ids3 = ids.reshape(n_tiles, bt, S).transpose(0, 2, 1)
                ids_block = (1, S, bt)
                ids_map = lambda g: (g, 0, 0)

            kernel = functools.partial(_pointer_gen_kernel,
                                       inv_temp=1.0 / float(temp),
                                       vocab=V, n_batch=bt, t_len=T)
            grid_spec = pltpu.PrefetchScalarGridSpec(
                num_scalar_prefetch=0,
                grid=(n_tiles,),
                in_specs=[
                    pl.BlockSpec((mt, D), lambda g: (g, 0)),
                    pl.BlockSpec((mt, S), lambda g: (g, 0)),
                    pl.BlockSpec(ids_block, ids_map),
                    pl.BlockSpec((D, v_fused), lambda g: (0, 0)),
                    pl.BlockSpec((1, v_fused), lambda g: (0, 0)),
                ],
                out_specs=pl.BlockSpec((mt, v_fused), lambda g: (g, 0)),
            )
            out_padded = pl.pallas_call(
                kernel,
                out_shape=jax.ShapeDtypeStruct((B * T, v_fused), jnp.float32),
                grid_spec=grid_spec,
                compiler_params=pltpu.CompilerParams(
                    dimension_semantics=("parallel",)),
            )(x2, attn2, ids3, w_f, b_f)
            # Slice the lane padding (and the fused p_gen column) back off.
            return out_padded.reshape(B, T, v_fused)[:, :, :v_ext]
        else:
            w_p, b_p, v_pad = self._padded_proj()
            kernel = functools.partial(_log_softmax_kernel, vocab=V)
            grid_spec = pltpu.PrefetchScalarGridSpec(
                num_scalar_prefetch=0,
                grid=(n_tiles,),
                in_specs=[
                    pl.BlockSpec((mt, D), lambda g: (g, 0)),
                    pl.BlockSpec((D, v_pad), lambda g: (0, 0)),
                    pl.BlockSpec((1, v_pad), lambda g: (0, 0)),
                ],
                out_specs=pl.BlockSpec((mt, v_pad), lambda g: (g, 0)),
            )
            out_padded = pl.pallas_call(
                kernel,
                out_shape=jax.ShapeDtypeStruct((B * T, v_pad), jnp.float32),
                grid_spec=grid_spec,
                compiler_params=pltpu.CompilerParams(
                    dimension_semantics=("parallel",)),
            )(x2, w_p, b_p)
            return out_padded.reshape(B, T, v_pad)[:, :, :V]


# ----------------------------------------------------------------------------
# Pure-JAX reference (mirrors the torch forward) for a correctness check.
# ----------------------------------------------------------------------------
def _reference(gen, x, attn, ids, extra_zeros, temp=1.0):
    p_gen = jax.nn.sigmoid(x @ gen.w_pgen + gen.b_pgen)
    logit = x @ gen.w_proj + gen.b_proj
    vocab_dist = jax.nn.softmax(logit / temp, axis=2)
    vocab_dist_ = p_gen * vocab_dist
    attn_d = jax.nn.softmax(attn / temp, axis=-1)
    attn_dist_ = (1.0 - p_gen) * attn_d
    B, oovs = extra_zeros.shape
    T = x.shape[1]
    ext = jnp.concatenate(
        [vocab_dist_, jnp.broadcast_to(extra_zeros[:, None, :], (B, T, oovs))],
        axis=2)
    onehot = jax.nn.one_hot(ids, ext.shape[-1], dtype=jnp.float32)    # (B, S, Vext)
    scat = jnp.einsum("bts,bsv->btv", attn_dist_, onehot)
    return jnp.log(ext + scat)


if __name__ == "__main__":
    B, T, D, V, S, OOVS = 2, 8, 32, 60, 16, 4

    key = jax.random.PRNGKey(0)
    kx, ka, ki, kp = jax.random.split(key, 4)

    x = jax.random.normal(kx, (B, T, D), jnp.float32)
    attn = jax.random.normal(ka, (B, T, S), jnp.float32)
    enc_ids = jax.random.randint(ki, (B, S), 0, V + OOVS, jnp.int32)
    extra_zeros = jnp.zeros((B, OOVS), jnp.float32)

    gen = Generator(D, V, kp)

    out = gen(x, attn_dist=attn, enc_batch_extend_vocab=enc_ids,
              extra_zeros=extra_zeros, temp=1, beam_search=False)
    out = jax.block_until_ready(out)

    ref = _reference(gen, x, attn, enc_ids, extra_zeros)
    out_np, ref_np = np.asarray(out), np.asarray(ref)
    finite = np.isfinite(ref_np)
    assert out_np.shape == (B, T, V + OOVS)
    # Tolerance relaxed vs. the exact-f32 reference because the kernel feeds
    # the MXU bf16 operands and uses the EUP approx reciprocal for softmax.
    err = np.max(np.abs(out_np[finite] - ref_np[finite]))
    assert np.allclose(out_np[finite], ref_np[finite], atol=2e-2, rtol=2e-2), err
    # -inf pattern (OOV columns with zero scattered attention) must match.
    assert np.array_equal(np.isfinite(out_np), finite)

    print("KERNEL_OK")
</pallas_src>

<mosaic_0001>
module attributes {stable_mosaic.version = 11 : i64} {
  func.func @_pointer_gen_kernel(%arg0: i32, %arg1: memref<16x32xf32, #tpu.memory_space<vmem>>, %arg2: memref<16x16xf32, #tpu.memory_space<vmem>>, %arg3: memref<1x16x2xi32, #tpu.memory_space<vmem>>, %arg4: memref<32x128xbf16, #tpu.memory_space<vmem>>, %arg5: memref<1x128xf32, #tpu.memory_space<vmem>>, %arg6: memref<16x128xf32, #tpu.memory_space<vmem>>) attributes {dimension_semantics = [#tpu.dimension_semantics<parallel>], iteration_bounds = array<i64: 1>, scalar_prefetch = 0 : i64, scratch_operands = 0 : i64, tpu.core_type = #tpu.core_type<tc>, window_params = [{transform_indices = @transform_0, window_bounds = array<i64: 16, 32>}, {transform_indices = @transform_1, window_bounds = array<i64: 16, 16>}, {transform_indices = @transform_2, window_bounds = array<i64: 1, 16, 2>}, {pipeline_mode = #tpu.pipeline_mode<synchronous>, transform_indices = @transform_3, window_bounds = array<i64: 32, 128>}, {pipeline_mode = #tpu.pipeline_mode<synchronous>, transform_indices = @transform_4, window_bounds = array<i64: 1, 128>}, {transform_indices = @transform_5, window_bounds = array<i64: 16, 128>}]} {
    %c0 = arith.constant 0 : index
    %c0_0 = arith.constant 0 : index
    %0 = vector.load %arg1[%c0, %c0_0] : memref<16x32xf32, #tpu.memory_space<vmem>>, vector<16x32xf32>
    %1 = arith.truncf %0 : vector<16x32xf32> to vector<16x32xbf16>
    %c0_1 = arith.constant 0 : index
    %c0_2 = arith.constant 0 : index
    %2 = vector.load %arg4[%c0_1, %c0_2] : memref<32x128xbf16, #tpu.memory_space<vmem>>, vector<32x128xbf16>
    %cst = arith.constant dense<0.000000e+00> : vector<16x128xf32>
    %3 = tpu.matmul %1, %2, %cst {dimension_numbers = #tpu.dot_dimension_numbers<[1], [0], [0], [1], [0, 0, 1, 1], [], []>} : vector<16x32xbf16>, vector<32x128xbf16>, vector<16x128xf32> -> vector<16x128xf32>
    %c0_3 = arith.constant 0 : index
    %c0_4 = arith.constant 0 : index
    %4 = vector.load %arg5[%c0_3, %c0_4] : memref<1x128xf32, #tpu.memory_space<vmem>>, vector<1x128xf32>
    %5 = vector.broadcast %4 : vector<1x128xf32> to vector<16x128xf32>
    %6 = arith.addf %3, %5 : vector<16x128xf32>
    %7 = vector.extract_strided_slice %6 {offsets = [0, 127], sizes = [16, 1], strides = [1, 1]} : vector<16x128xf32> to vector<16x1xf32>
    %8 = arith.negf %7 : vector<16x1xf32>
    %9 = math.exp %8 : vector<16x1xf32>
    %cst_5 = arith.constant 1.000000e+00 : f32
    %10 = vector.broadcast %cst_5 : f32 to vector<16x1xf32>
    %11 = arith.addf %10, %9 : vector<16x1xf32>
    %12 = arith.divf %10, %11 : vector<16x1xf32>
    %13 = tpu.iota {dimensions = array<i32: 1>} : vector<1x128xi32>
    %c60_i32 = arith.constant 60 : i32
    %14 = vector.broadcast %c60_i32 : i32 to vector<1x128xi32>
    %15 = arith.cmpi slt, %13, %14 : vector<1x128xi32>
    %cst_6 = arith.constant 1.000000e+00 : f32
    %16 = vector.broadcast %cst_6 : f32 to vector<16x128xf32>
    %17 = arith.mulf %6, %16 : vector<16x128xf32>
    %cst_7 = arith.constant -1.000000e+30 : f32
    %18 = vector.shape_cast %15 : vector<1x128xi1> to vector<1x128xi1>
    %19 = vector.broadcast %18 : vector<1x128xi1> to vector<16x128xi1>
    %20 = vector.broadcast %cst_7 : f32 to vector<16x128xf32>
    %21 = arith.select %19, %17, %20 : vector<16x128xi1>, vector<16x128xf32>
    %cst_8 = arith.constant dense<0xFF800000> : vector<16xf32>
    %22 = vector.multi_reduction <maximumf>, %21, %cst_8 [1] : vector<16x128xf32> to vector<16xf32>
    %23 = vector.shape_cast %22 : vector<16xf32> to vector<16x1xf32>
    %24 = vector.broadcast %23 : vector<16x1xf32> to vector<16x128xf32>
    %25 = arith.subf %21, %24 : vector<16x128xf32>
    %26 = math.exp %25 : vector<16x128xf32>
    %cst_9 = arith.constant dense<0.000000e+00> : vector<16xf32>
    %27 = vector.multi_reduction <add>, %26, %cst_9 [1] : vector<16x128xf32> to vector<16xf32>
    %28 = vector.shape_cast %27 : vector<16xf32> to vector<16x1xf32>
    %29 = tpu.reciprocal %28 {approx = true} : vector<16x1xf32> -> vector<16x1xf32>
    %30 = vector.broadcast %29 : vector<16x1xf32> to vector<16x128xf32>
    %31 = arith.mulf %26, %30 : vector<16x128xf32>
    %32 = vector.broadcast %12 : vector<16x1xf32> to vector<16x128xf32>
    %33 = arith.mulf %32, %31 : vector<16x128xf32>
    %c0_10 = arith.constant 0 : index
    %c0_11 = arith.constant 0 : index
    %34 = vector.load %arg2[%c0_10, %c0_11] : memref<16x16xf32, #tpu.memory_space<vmem>>, vector<16x16xf32>
    %cst_12 = arith.constant 1.000000e+00 : f32
    %35 = vector.broadcast %cst_12 : f32 to vector<16x16xf32>
    %36 = arith.mulf %34, %35 : vector<16x16xf32>
    %cst_13 = arith.constant dense<0xFF800000> : vector<16xf32>
    %37 = vector.multi_reduction <maximumf>, %36, %cst_13 [1] : vector<16x16xf32> to vector<16xf32>
    %38 = vector.shape_cast %37 : vector<16xf32> to vector<16x1xf32>
    %39 = vector.broadcast %38 : vector<16x1xf32> to vector<16x16xf32>
    %40 = arith.subf %36, %39 : vector<16x16xf32>
    %41 = math.exp %40 : vector<16x16xf32>
    %cst_14 = arith.constant dense<0.000000e+00> : vector<16xf32>
    %42 = vector.multi_reduction <add>, %41, %cst_14 [1] : vector<16x16xf32> to vector<16xf32>
    %43 = vector.shape_cast %42 : vector<16xf32> to vector<16x1xf32>
    %44 = tpu.reciprocal %43 {approx = true} : vector<16x1xf32> -> vector<16x1xf32>
    %45 = vector.broadcast %44 : vector<16x1xf32> to vector<16x16xf32>
    %46 = arith.mulf %41, %45 : vector<16x16xf32>
    %cst_15 = arith.constant 1.000000e+00 : f32
    %47 = vector.broadcast %cst_15 : f32 to vector<16x1xf32>
    %48 = arith.subf %47, %12 : vector<16x1xf32>
    %49 = vector.broadcast %48 : vector<16x1xf32> to vector<16x16xf32>
    %50 = arith.mulf %49, %46 : vector<16x16xf32>
    %51 = arith.truncf %50 : vector<16x16xf32> to vector<16x16xbf16>
    %52 = tpu.iota {dimensions = array<i32: 1>} : vector<16x128xi32>
    %c0_16 = arith.constant 0 : index
    %c0_17 = arith.constant 0 : index
    %c0_18 = arith.constant 0 : index
    %53 = vector.load %arg3[%c0_16, %c0_17, %c0_18] : memref<1x16x2xi32, #tpu.memory_space<vmem>>, vector<1x16x1xi32>
    %54 = vector.shape_cast %53 : vector<1x16x1xi32> to vector<16x1xi32>
    %55 = vector.broadcast %54 : vector<16x1xi32> to vector<16x128xi32>
    %56 = arith.cmpi eq, %52, %55 : vector<16x128xi32>
    %57 = arith.extui %56 : vector<16x128xi1> to vector<16x128xi32>
    %58 = arith.sitofp %57 : vector<16x128xi32> to vector<16x128xf32>
    %59 = arith.truncf %58 : vector<16x128xf32> to vector<16x128xbf16>
    %60 = vector.extract_strided_slice %51 {offsets = [0, 0], sizes = [8, 16], strides = [1, 1]} : vector<16x16xbf16> to vector<8x16xbf16>
    %cst_19 = arith.constant dense<0.000000e+00> : vector<8x128xf32>
    %61 = tpu.matmul %60, %59, %cst_19 {dimension_numbers = #tpu.dot_dimension_numbers<[1], [0], [0], [1], [0, 0, 1, 1], [], []>} : vector<8x16xbf16>, vector<16x128xbf16>, vector<8x128xf32> -> vector<8x128xf32>
    %62 = vector.extract_strided_slice %33 {offsets = [0, 0], sizes = [8, 128], strides = [1, 1]} : vector<16x128xf32> to vector<8x128xf32>
    %63 = arith.addf %62, %61 : vector<8x128xf32>
    %64 = math.log %63 : vector<8x128xf32>
    %c0_20 = arith.constant 0 : index
    %c0_21 = arith.constant 0 : index
    %65 = vector.load %arg6[%c0_20, %c0_21] : memref<16x128xf32, #tpu.memory_space<vmem>>, vector<8x128xf32>
    tpu.vector_store %arg6[%c0_20, %c0_21], %64 {strides = array<i32>} : memref<16x128xf32, #tpu.memory_space<vmem>>, vector<8x128xf32>,
    %c0_22 = arith.constant 0 : index
    %c0_23 = arith.constant 0 : index
    %c1 = arith.constant 1 : index
    %66 = vector.load %arg3[%c0_22, %c0_23, %c1] : memref<1x16x2xi32, #tpu.memory_space<vmem>>, vector<1x16x1xi32>
    %67 = vector.shape_cast %66 : vector<1x16x1xi32> to vector<16x1xi32>
    %68 = vector.broadcast %67 : vector<16x1xi32> to vector<16x128xi32>
    %69 = arith.cmpi eq, %52, %68 : vector<16x128xi32>
    %70 = arith.extui %69 : vector<16x128xi1> to vector<16x128xi32>
    %71 = arith.sitofp %70 : vector<16x128xi32> to vector<16x128xf32>
    %72 = arith.truncf %71 : vector<16x128xf32> to vector<16x128xbf16>
    %73 = vector.extract_strided_slice %51 {offsets = [8, 0], sizes = [8, 16], strides = [1, 1]} : vector<16x16xbf16> to vector<8x16xbf16>
    %cst_24 = arith.constant dense<0.000000e+00> : vector<8x128xf32>
    %74 = tpu.matmul %73, %72, %cst_24 {dimension_numbers = #tpu.dot_dimension_numbers<[1], [0], [0], [1], [0, 0, 1, 1], [], []>} : vector<8x16xbf16>, vector<16x128xbf16>, vector<8x128xf32> -> vector<8x128xf32>
    %75 = vector.extract_strided_slice %33 {offsets = [8, 0], sizes = [8, 128], strides = [1, 1]} : vector<16x128xf32> to vector<8x128xf32>
    %76 = arith.addf %75, %74 : vector<8x128xf32>
    %77 = math.log %76 : vector<8x128xf32>
    %c8 = arith.constant 8 : index
    %c0_25 = arith.constant 0 : index
    %78 = vector.load %arg6[%c8, %c0_25] : memref<16x128xf32, #tpu.memory_space<vmem>>, vector<8x128xf32>
    tpu.vector_store %arg6[%c8, %c0_25], %77 {strides = array<i32>} : memref<16x128xf32, #tpu.memory_space<vmem>>, vector<8x128xf32>,
    return
  }
  func.func @transform_0(%arg0: i32) -> (i32, i32) {
    %c0_i32 = arith.constant 0 : i32
    %c0_i32_0 = arith.constant 0 : i32
    return %arg0, %c0_i32 : i32, i32
  }
  func.func @transform_1(%arg0: i32) -> (i32, i32) {
    %c0_i32 = arith.constant 0 : i32
    %c0_i32_0 = arith.constant 0 : i32
    return %arg0, %c0_i32 : i32, i32
  }
  func.func @transform_2(%arg0: i32) -> (i32, i32, i32) {
    %c0_i32 = arith.constant 0 : i32
    %c0_i32_0 = arith.constant 0 : i32
    %c0_i32_1 = arith.constant 0 : i32
    return %arg0, %c0_i32, %c0_i32_0 : i32, i32, i32
  }
  func.func @transform_3(%arg0: i32) -> (i32, i32) {
    %c0_i32 = arith.constant 0 : i32
    %c0_i32_0 = arith.constant 0 : i32
    %c0_i32_1 = arith.constant 0 : i32
    return %c0_i32, %c0_i32_0 : i32, i32
  }
  func.func @transform_4(%arg0: i32) -> (i32, i32) {
    %c0_i32 = arith.constant 0 : i32
    %c0_i32_0 = arith.constant 0 : i32
    %c0_i32_1 = arith.constant 0 : i32
    return %c0_i32, %c0_i32_0 : i32, i32
  }
  func.func @transform_5(%arg0: i32) -> (i32, i32) {
    %c0_i32 = arith.constant 0 : i32
    %c0_i32_0 = arith.constant 0 : i32
    return %arg0, %c0_i32 : i32, i32
  }
}

</mosaic_0001>

<llo_original>
// kernel: tpu_custom_call.1
$region0: #{tpu_custom_call.1}
  #allocation0 [shape = 'u32[]', space=smem, size = 0x4, offset = 0x4, fixed_abs, tag = 'smem constant byte address 0x4 - core index']
  #allocation1 [shape = 'u32[144,128]{1,0:T(1,128)}', space=vmem, size = 0x12000, scoped, tag = 'internal scratch']
  %s0 = inlined_call_operand.vmem [shape: f32[16,32], index: 0, kind: input, shape index: {}]
  %s1 = inlined_call_operand.hbm [shape: f32[16,16], index: 1, kind: input, shape index: {}]
  %s2 = inlined_call_operand.vmem [shape: s32[1,16,2], index: 2, kind: input, shape index: {}]
  %s3 = inlined_call_operand.hbm [shape: bf16[32,128], index: 3, kind: input, shape index: {}]
  %s4 = inlined_call_operand.vmem [shape: f32[1,128], index: 4, kind: input, shape index: {}]
  %s5 = inlined_call_operand.hbm [shape: f32[16,128], index: 5, kind: output, shape index: {}]
  %s6 = sld [smem:[#allocation0]]
  $region38: #{tpu_custom_call.1} parent=0
    _
  %s8 = ssub.s32 1, %s6
  %s9 = scalar_select 0, %s8, %s6
  $region1: #{tpu_custom_call.1} parent=0
    #allocation2 [shape = 'u8[8192]{0}', space=vmem, size = 0x2000, scoped, tag = 'input window, operand 1, single buffered']
    #allocation3 [shape = 's32[1]{0}', space=sflag, size = 0x4, scoped, tag = 'scoped memory for tpu_custom_call.1']
    #allocation4 [shape = 's32[1]{0}', space=sflag, size = 0x4, scoped, tag = 'scoped memory for tpu_custom_call.1']
    #allocation5 [shape = 'u8[8192]{0}', space=vmem, size = 0x2000, scoped, tag = 'input window, operand 3, single buffered']
    #allocation6 [shape = 's32[1]{0}', space=sflag, size = 0x4, scoped, tag = 'scoped memory for tpu_custom_call.1']
    #allocation7 [shape = 'u8[8192]{0}', space=vmem, size = 0x2000, scoped, tag = 'output window, operand 0, single buffered']
    %10 = vsyncpa [#allocation3], 0
    %11 = vsyncpa [#allocation6], 0
    %12 = vsyncpa [#allocation4], 0
    // Predicated region
    $region2: #{tpu_custom_call.1} parent=1 // pred_check
      _
    $region3: #{tpu_custom_call.1} parent=1 // pred_check_branch
      %14 = sbr.rel (0) target = $region5
    $region4: #{tpu_custom_call.1} parent=1 // pred_region
      _
    $region5: #{tpu_custom_call.1} parent=1 // pred_fallthru
      _
    // Predicated region
    $region6: #{tpu_custom_call.1} parent=1 // pred_check
      _
    $region7: #{tpu_custom_call.1} parent=1 // pred_check_branch
      %16 = sbr.rel (0) target = $region9
    $region8: #{tpu_custom_call.1} parent=1 // pred_region
      %s18 = ssub.s32 256, 256
      %19 = vsyncadd [#allocation3], %s18
      %s20 = sshll.u32 [#allocation2], 4
      %s21 = int_to_ptr.vmem [resolvable:$true] %s20
      %26 = dma.hbm_to_vmem [thread:$0]  %s1, 256, %s21, [#allocation3], 128, 128, 8
    $region9: #{tpu_custom_call.1} parent=1 // pred_fallthru
      _
    // Predicated region
    $region10: #{tpu_custom_call.1} parent=1 // pred_check
      _
    $region11: #{tpu_custom_call.1} parent=1 // pred_check_branch
      %28 = sbr.rel (0) target = $region13
    $region12: #{tpu_custom_call.1} parent=1 // pred_region
      _
    $region13: #{tpu_custom_call.1} parent=1 // pred_fallthru
      _
    // Predicated region
    $region14: #{tpu_custom_call.1} parent=1 // pred_check
      _
    $region15: #{tpu_custom_call.1} parent=1 // pred_check_branch
      %30 = sbr.rel (0) target = $region17
    $region16: #{tpu_custom_call.1} parent=1 // pred_region
      %s32 = ssub.s32 256, 256
      %33 = vsyncadd [#allocation6], %s32
      %s34 = sshll.u32 [#allocation5], 4
      %s35 = int_to_ptr.vmem [resolvable:$true] %s34
      %40 = dma.hbm_to_vmem [thread:$0]  %s3, 256, %s35, [#allocation6], 64, 64, 4
    $region17: #{tpu_custom_call.1} parent=1 // pred_fallthru
      _
    // Predicated region
    $region18: #{tpu_custom_call.1} parent=1 // pred_check
      _
    $region19: #{tpu_custom_call.1} parent=1 // pred_check_branch
      %42 = sbr.rel (0) target = $region21
    $region20: #{tpu_custom_call.1} parent=1 // pred_region
      _
    $region21: #{tpu_custom_call.1} parent=1 // pred_fallthru
      _
    // Predicated region
    $region22: #{tpu_custom_call.1} parent=1 // pred_check
      _
    $region23: #{tpu_custom_call.1} parent=1 // pred_check_branch
      %44 = sbr.rel (0) target = $region25
    $region24: #{tpu_custom_call.1} parent=1 // pred_region
      %45 = dma.done [#allocation3], 256
    $region25: #{tpu_custom_call.1} parent=1 // pred_fallthru
      _
    // Predicated region
    $region26: #{tpu_custom_call.1} parent=1 // pred_check
      _
    $region27: #{tpu_custom_call.1} parent=1 // pred_check_branch
      %47 = sbr.rel (0) target = $region29
    $region28: #{tpu_custom_call.1} parent=1 // pred_region
      %48 = dma.done [#allocation6], 256
    $region29: #{tpu_custom_call.1} parent=1 // pred_fallthru
      _
    %v50 = vld [vmem:[%s0] sm:$0xff]
    %v51 = vld [vmem:[%s0 + $0x8] sm:$0xff]
    %v52 = vpack.c.bf16 %v51, %v50
    %v53 = vld [vmem:[#allocation5] sm:$0xf]
    %v54 = vld [vmem:[#allocation5 + $0x4] sm:$0xf]
    %v55 = vld [vmem:[#allocation5 + $0x8] sm:$0xf]
    %v56 = vld [vmem:[#allocation5 + $0xc] sm:$0xf]
    %v57 = vld [vmem:[%s4] sm:$0x1]
    %v59 = vlaneseq
    %v60 = vshrl.u32 %v59, 7
    %v61 = vsub.s32 0, %v60
    %v62 = vrot.slane %v57, %v61
    %v68 = vunpack.c.l.b16 %v53
    %v69 = vunpack.c.l.b16 %v54
    %v70 = vunpack.c.l.b16 %v55
    %v71 = vunpack.c.l.b16 %v56
    %v72 = vpack.c.b16 %v69, %v68
    %v73 = vpack.c.b16 %v71, %v70
    %vm76 = vcmask 261120
    %v78 = vsel %vm76, %v52, 0
    %80 = vmatprep.subr.bf16.mxu0 0
    %81 = vmatpush1.bf16.msra.mxu0 %v72
    %82 = vmatprep.subr.bf16.mxu0 0
    %83 = vmatpush1.bf16.msra.mxu0 %v73
    %84 = vmatprep.subr.bf16.mxu0 0
    %85 = vmatpush1.bf16.msra.mxu0 0
    %86 = vmatprep.subr.bf16.mxu0 0
    %87 = vmatpush1.bf16.msra.mxu0 0
    %88 = vmatprep.subr.bf16.mxu0 0
    %89 = vmatpush1.bf16.msra.mxu0 0
    %90 = vmatprep.subr.bf16.mxu0 0
    %91 = vmatpush1.bf16.msra.mxu0 0
    %92 = vmatprep.subr.bf16.mxu0 0
    %93 = vmatpush1.bf16.msra.mxu0 0
    %94 = vmatprep.subr.bf16.mxu0 0
    %95 = vmatpush1.bf16.msra.mxu0 0
    %96 = vmatprep.subr.bf16.mxu0 0
    %97 = vmatpush1.bf16.msra.mxu0 0
    %98 = vmatprep.subr.bf16.mxu0 0
    %99 = vmatpush1.bf16.msra.mxu0 0
    %100 = vmatprep.subr.bf16.mxu0 0
    %101 = vmatpush1.bf16.msra.mxu0 0
    %102 = vmatprep.subr.bf16.mxu0 0
    %103 = vmatpush1.bf16.msra.mxu0 0
    %104 = vmatprep.subr.bf16.mxu0 0
    %105 = vmatpush1.bf16.msra.mxu0 0
    %106 = vmatprep.subr.bf16.mxu0 0
    %107 = vmatpush1.bf16.msra.mxu0 0
    %108 = vmatprep.subr.bf16.mxu0 0
    %109 = vmatpush1.bf16.msra.mxu0 0
    %110 = vmatprep.subr.bf16.mxu0 0
    %111 = vmatpush1.bf16.msra.mxu0 0
    %112 = vmatprep.mubr.bf16.mxu0 0
    %113 = vmatmul.mubr.bf16.gmra.mrb[0].mxu0 %v78
    %v114 = vpop.f32.mrb[0].mxu0
    %v115 = vadd.f32 %v62, %v114
    %v116 = vpop.f32.mrb[0].mxu0
    %v117 = vpop.f32.mrb[0].mxu0
    %v118 = vadd.f32 %v62, %v117
    %v119 = vpop.f32.mrb[0].mxu0
    %120 = vdwg.mxu0
    %v121 = vxor.u32 %v115, 2147483648
    %v122 = vxor.u32 %v118, 2147483648
    %v123 = vmul.f32 %v121, 1.442695
    %v124 = vpow.pop %v123
    %v125 = vmul.f32 %v122, 1.442695
    %v126 = vpow.pop %v125
    %v127 = vadd.f32 %v124, 1.0
    %v128 = vadd.f32 %v126, 1.0
    %v129 = vrcp.pop %v127
    %v130 = vmul.f32 1.0, %v129
    %v131 = vrcp.pop %v128
    %v132 = vmul.f32 1.0, %v131
    %v133 = vlaneseq
    %v134 = vand.u32 %v133, 127
    %vm135 = vcmp.lt.s32.totalorder %v134, 60
    %v136 = vsel %vm135, 1, 0
    %vm137 = vcmp.eq.s32.totalorder %v136, 1
    %v138 = vsel %vm137, %v115, -1e+30
    %v139 = vsel %vm137, %v118, -1e+30
    %140 = vmax.xlane.f32.xlu0 %v138
    %v141 = vpop.xlane.xlu0 %140
    %142 = vmax.xlane.f32.xlu0 %v139
    %v143 = vpop.xlane.xlu0 %142
    %v144 = vsub.f32 %v138, %v141
    %v145 = vsub.f32 %v139, %v143
    %v146 = vmul.f32 %v144, 1.442695
    %v147 = vpow.pop %v146
    %v148 = vmul.f32 %v145, 1.442695
    %v149 = vpow.pop %v148
    %150 = vadd.xlane.f32.xlu0 %v147
    %v151 = vpop.xlane.xlu0 %150
    %152 = vadd.xlane.f32.xlu0 %v149
    %v153 = vpop.xlane.xlu0 %152
    %v154 = vrcp.pop %v151
    %v155 = vrcp.pop %v153
    %v156 = vmul.f32 %v147, %v154
    %v157 = vmul.f32 %v149, %v155
    %159 = vset.pattern.permute.xlu0 127
    %160 = vperm.xlu0 %159, %v130
    %v161 = vpop.permute.xlu0 %160
    %164 = vset.pattern.permute.xlu0 127
    %165 = vperm.xlu0 %164, %v132
    %v166 = vpop.permute.xlu0 %165
    %v168 = vmul.f32 %v161, %v156
    %v169 = vmul.f32 %v166, %v157
    %v170 = vld [vmem:[#allocation2] sm:$0xff]
    %v171 = vld [vmem:[#allocation2 + $0x8] sm:$0xff]
    %vm172 = vcmask 130048
    %v173 = vsel %vm172, %v170, -inf
    %174 = vmax.xlane.f32.xlu0 %v173
    %v175 = vpop.xlane.xlu0 %174
    %v176 = vsel %vm172, %v171, -inf
    %177 = vmax.xlane.f32.xlu0 %v176
    %v178 = vpop.xlane.xlu0 %177
    %v179 = vsub.f32 %v170, %v175
    %v180 = vsub.f32 %v171, %v178
    %v181 = vmul.f32 %v179, 1.442695
    %v182 = vpow.pop %v181
    %v183 = vmul.f32 %v180, 1.442695
    %v184 = vpow.pop %v183
    %v185 = vsel %vm172, %v182, 0.0
    %186 = vadd.xlane.f32.xlu0 %v185
    %v187 = vpop.xlane.xlu0 %186
    %v188 = vsel %vm172, %v184, 0.0
    %189 = vadd.xlane.f32.xlu0 %v188
    %v190 = vpop.xlane.xlu0 %189
    %v191 = vrcp.pop %v187
    %v192 = vrcp.pop %v190
    %v193 = vmul.f32 %v182, %v191
    %v194 = vmul.f32 %v184, %v192
    %v195 = vsub.f32 1.0, %v130
    %v196 = vsub.f32 1.0, %v132
    %198 = vset.pattern.permute.xlu0 127
    %199 = vperm.xlu0 %198, %v195
    %v200 = vpop.permute.xlu0 %199
    %203 = vset.pattern.permute.xlu0 127
    %204 = vperm.xlu0 %203, %v196
    %v205 = vpop.permute.xlu0 %204
    %v207 = vmul.f32 %v200, %v193
    %v208 = vmul.f32 %v205, %v194
    %v209 = vpack.c.bf16 %v208, %v207
    %v210 = vld [vmem:[%s2] sm:$0xff]
    %v211 = vld [vmem:[%s2 + $0x8] sm:$0xff]
    %212 = vset.pattern.permute.xlu0 0
    %213 = vperm.xlu0 %212, %v210
    %v214 = vpop.permute.xlu0 %213
    %215 = vset.pattern.permute.xlu0 0
    %216 = vperm.xlu0 %215, %v211
    %v217 = vpop.permute.xlu0 %216
    %vm218 = vcmp.eq.s32.totalorder %v134, %v214
    %vm219 = vcmp.eq.s32.totalorder %v134, %v217
    %v220 = vsel %vm218, 1, 0
    %v221 = vsel %vm219, 1, 0
    %v222 = vcvt.s32.f32 %v220
    %v223 = vcvt.s32.f32 %v221
    %v224 = vpack.c.bf16 %v223, %v222
    %v226 = vsel %vm172, %v209, 0
    %228 = vmatprep.subr.bf16.mxu0 0
    %229 = vmatpush1.bf16.msra.mxu0 %v224
    %230 = vmatprep.subr.bf16.mxu0 0
    %231 = vmatpush1.bf16.msra.mxu0 0
    %232 = vmatprep.subr.bf16.mxu0 0
    %233 = vmatpush1.bf16.msra.mxu0 0
    %234 = vmatprep.subr.bf16.mxu0 0
    %235 = vmatpush1.bf16.msra.mxu0 0
    %236 = vmatprep.subr.bf16.mxu0 0
    %237 = vmatpush1.bf16.msra.mxu0 0
    %238 = vmatprep.subr.bf16.mxu0 0
    %239 = vmatpush1.bf16.msra.mxu0 0
    %240 = vmatprep.subr.bf16.mxu0 0
    %241 = vmatpush1.bf16.msra.mxu0 0
    %242 = vmatprep.subr.bf16.mxu0 0
    %243 = vmatpush1.bf16.msra.mxu0 0
    %244 = vmatprep.subr.bf16.mxu0 0
    %245 = vmatpush1.bf16.msra.mxu0 0
    %246 = vmatprep.subr.bf16.mxu0 0
    %247 = vmatpush1.bf16.msra.mxu0 0
    %248 = vmatprep.subr.bf16.mxu0 0
    %249 = vmatpush1.bf16.msra.mxu0 0
    %250 = vmatprep.subr.bf16.mxu0 0
    %251 = vmatpush1.bf16.msra.mxu0 0
    %252 = vmatprep.subr.bf16.mxu0 0
    %253 = vmatpush1.bf16.msra.mxu0 0
    %254 = vmatprep.subr.bf16.mxu0 0
    %255 = vmatpush1.bf16.msra.mxu0 0
    %256 = vmatprep.subr.bf16.mxu0 0
    %257 = vmatpush1.bf16.msra.mxu0 0
    %258 = vmatprep.subr.bf16.mxu0 0
    %259 = vmatpush1.bf16.msra.mxu0 0
    %260 = vmatprep.mubr.bf16.mxu0 0
    %261 = vmatmul.mubr.bf16.gmra.mrb[0].mxu0 %v226
    %v262 = vpop.f32.mrb[0].mxu0
    %v263 = vadd.f32 0.0, %v262
    %v264 = vpop.f32.mrb[0].mxu0
    %v265 = vpop.f32.mrb[0].mxu0
    %v266 = vpop.f32.mrb[0].mxu0
    %267 = vdwg.mxu0
    %v268 = vadd.f32 %v168, %v263
    %v269 = vlog2.pop %v268
    %v270 = vmul.f32 %v269, 0.6931472
    %271 = vst [vmem:[#allocation7] sm:$0xff] %v270
    %v272 = vld [vmem:[%s2] sm:$0xff]
    %v273 = vld [vmem:[%s2 + $0x8] sm:$0xff]
    %274 = vset.pattern.permute.xlu0 1
    %275 = vperm.xlu0 %274, %v272
    %v276 = vpop.permute.xlu0 %275
    %277 = vset.pattern.permute.xlu0 1
    %278 = vperm.xlu0 %277, %v273
    %v279 = vpop.permute.xlu0 %278
    %vm280 = vcmp.eq.s32.totalorder %v134, %v276
    %vm281 = vcmp.eq.s32.totalorder %v134, %v279
    %v282 = vsel %vm280, 1, 0
    %v283 = vsel %vm281, 1, 0
    %v284 = vcvt.s32.f32 %v282
    %v285 = vcvt.s32.f32 %v283
    %v286 = vpack.c.bf16 %v285, %v284
    %v288 = vrot.slane %v209, 4
    %v290 = vsel %vm172, %v288, 0
    %292 = vmatprep.subr.bf16.mxu0 0
    %293 = vmatpush1.bf16.msra.mxu0 %v286
    %294 = vmatprep.subr.bf16.mxu0 0
    %295 = vmatpush1.bf16.msra.mxu0 0
    %296 = vmatprep.subr.bf16.mxu0 0
    %297 = vmatpush1.bf16.msra.mxu0 0
    %298 = vmatprep.subr.bf16.mxu0 0
    %299 = vmatpush1.bf16.msra.mxu0 0
    %300 = vmatprep.subr.bf16.mxu0 0
    %301 = vmatpush1.bf16.msra.mxu0 0
    %302 = vmatprep.subr.bf16.mxu0 0
    %303 = vmatpush1.bf16.msra.mxu0 0
    %304 = vmatprep.subr.bf16.mxu0 0
    %305 = vmatpush1.bf16.msra.mxu0 0
    %306 = vmatprep.subr.bf16.mxu0 0
    %307 = vmatpush1.bf16.msra.mxu0 0
    %308 = vmatprep.subr.bf16.mxu0 0
    %309 = vmatpush1.bf16.msra.mxu0 0
    %310 = vmatprep.subr.bf16.mxu0 0
    %311 = vmatpush1.bf16.msra.mxu0 0
    %312 = vmatprep.subr.bf16.mxu0 0
    %313 = vmatpush1.bf16.msra.mxu0 0
    %314 = vmatprep.subr.bf16.mxu0 0
    %315 = vmatpush1.bf16.msra.mxu0 0
    %316 = vmatprep.subr.bf16.mxu0 0
    %317 = vmatpush1.bf16.msra.mxu0 0
    %318 = vmatprep.subr.bf16.mxu0 0
    %319 = vmatpush1.bf16.msra.mxu0 0
    %320 = vmatprep.subr.bf16.mxu0 0
    %321 = vmatpush1.bf16.msra.mxu0 0
    %322 = vmatprep.subr.bf16.mxu0 0
    %323 = vmatpush1.bf16.msra.mxu0 0
    %324 = vmatprep.mubr.bf16.mxu0 0
    %325 = vmatmul.mubr.bf16.gmra.mrb[0].mxu0 %v290
    %v326 = vpop.f32.mrb[0].mxu0
    %v327 = vadd.f32 0.0, %v326
    %v328 = vpop.f32.mrb[0].mxu0
    %v329 = vpop.f32.mrb[0].mxu0
    %v330 = vpop.f32.mrb[0].mxu0
    %331 = vdwg.mxu0
    %v332 = vadd.f32 %v169, %v327
    %v333 = vlog2.pop %v332
    %v334 = vmul.f32 %v333, 0.6931472
    %335 = vst [vmem:[#allocation7 + $0x8] sm:$0xff] %v334
    // Predicated region
    $region30: #{tpu_custom_call.1} parent=1 // pred_check
      _
    $region31: #{tpu_custom_call.1} parent=1 // pred_check_branch
      %337 = sbr.rel (0) target = $region33
    $region32: #{tpu_custom_call.1} parent=1 // pred_region
      %s339 = ssub.s32 256, 256
      %340 = vsyncadd [#allocation4], %s339
      %s341 = sshll.u32 [#allocation7], 4
      %s342 = int_to_ptr.vmem [resolvable:$true] %s341
      %347 = dma.vmem_to_hbm [thread:$0]  %s342, 256, %s5, [#allocation4], 128, 128, 8
    $region33: #{tpu_custom_call.1} parent=1 // pred_fallthru
      _
    // Predicated region
    $region34: #{tpu_custom_call.1} parent=1 // pred_check
      _
    $region35: #{tpu_custom_call.1} parent=1 // pred_check_branch
      %349 = sbr.rel (0) target = $region37
    $region36: #{tpu_custom_call.1} parent=1 // pred_region
      %350 = dma.done [#allocation4], 256
    $region37: #{tpu_custom_call.1} parent=1 // pred_fallthru
      _
    %351 = vsyncpa [#allocation3], 1
    %352 = vsyncpa [#allocation6], 1
    %353 = vsyncpa [#allocation4], 1

</llo_original>
